<compile_context>
chip_gen: v5e
topology: v5e:2x2
jax: 0.10.0
libtpu: 0.0.40
codegen_flags: <defaults>
</compile_context>

<pallas_src>
import numpy as np
import jax
import jax.numpy as jnp
from jax.experimental import pallas as pl
from jax.experimental.pallas import tpu as pltpu


# ---------------------------------------------------------------------------
# Deterministic synthetic hierarchy (replaces Node / get_ancestor_matrix / get_U)
# ---------------------------------------------------------------------------
def build_C(parents, lambdas):
    """C = L @ diag(lambdas) @ L.T, L[i, j] = 1 iff j is an ancestor of i (incl. i)."""
    n = len(parents)
    L = np.zeros((n, n), dtype=np.float64)
    for i in range(n):
        j = i
        while j != -1:
            L[i, j] = 1.0
            j = parents[j]
    U = np.diag(np.asarray(lambdas, dtype=np.float64))
    return (L @ U @ L.T).astype(np.float32)


def _round_up(x, m):
    return ((x + m - 1) // m) * m


def _vmem_capacity_bytes():
    """Physical VMEM per TensorCore; conservative fallback if query fails."""
    try:
        cap = int(pltpu.get_tpu_info().vmem_capacity_bytes)
        if cap > 0:
            return cap
    except Exception:
        pass
    return 64 * 1024 * 1024  # v7x-sized conservative default


def _resident_bytes(T, d_pad, c_bytes, wk_bytes):
    # Double-buffered C tile + W_k tile + W_rows tile, plus acc/out slack.
    return (2 * T * T * c_bytes
            + 2 * T * d_pad * wk_bytes
            + 2 * T * d_pad * 4
            + 2 * 8 * 128 * 4
            + d_pad * 4)


# ---------------------------------------------------------------------------
# Pallas kernel: per-(row-block i, col-block k >= i) step of sum((C @ W) * W)
# ---------------------------------------------------------------------------
def _hreg_kernel(c_ref, wk_ref, wr_ref, o_ref, acc_ref):
    i = pl.program_id(0)
    k = pl.program_id(1)

    @pl.when(k == 0)
    def _():
        acc_ref[...] = jnp.zeros_like(acc_ref)

    # Lower-triangle blocks are skipped (C and W Wᵀ are symmetric); their C /
    # W_k index_maps are remapped onto the next valid block so no DMA is spent
    # on them either.  Off-diagonal upper blocks count twice.
    @pl.when(k >= i)
    def _():
        # (T, T) @ (T, Dp) on the MXU; operands already in their stream dtype
        # (bf16 or f32, cast once in the wrapper), f32 accumulation.
        cw = jnp.dot(c_ref[...], wk_ref[...], preferred_element_type=jnp.float32)
        # Sublane-only reduce -> (1, Dp) partial; accumulate with plain VPU adds.
        part = jnp.sum(cw * wr_ref[...], axis=0, keepdims=True)
        scale = jnp.where(k > i, jnp.float32(2.0), jnp.float32(1.0))
        acc_ref[...] += scale * part

    @pl.when(k == pl.num_programs(1) - 1)
    def _():
        # Single cross-lane reduce per row block, one aligned (8,128) writeback.
        o_ref[...] = jnp.broadcast_to(jnp.sum(acc_ref[...]), o_ref.shape)


def hierarchical_regularization(C, weight, *, tile=512, precision="bf16"):
    """sum(C * (weight @ weight.T)) via the fused, tiled, symmetry-folded form."""
    N, D = weight.shape
    assert C.shape == (N, N)

    if precision == "bf16":
        c_dtype = wk_dtype = jnp.bfloat16     # halves the dominant C HBM stream,
    elif precision == "f32":                  # native bf16 MXU path (f32 accum)
        c_dtype = wk_dtype = jnp.float32
    else:
        raise ValueError(f"unknown precision: {precision!r}")

    weight_f32 = jnp.asarray(weight, jnp.float32)
    C = jnp.asarray(C, c_dtype)               # cast in the wrapper, not per step
    w_k = weight_f32.astype(wk_dtype)         # matmul operand copy
    # w_rows (elementwise operand / accumulation side) stays f32 for accuracy.

    d_pad = _round_up(D, 128)
    c_bytes = jnp.dtype(c_dtype).itemsize
    wk_bytes = jnp.dtype(wk_dtype).itemsize

    vmem_cap = _vmem_capacity_bytes()
    vmem_limit = min(100 * 1024 * 1024, int(vmem_cap * 0.75))

    # Square tiles (tm == tk == T) so block symmetry maps blocks onto blocks.
    # Largest (8,128)-aligned T that fits the VMEM budget with resident D.
    T = min(_round_up(max(tile, 128), 128), _round_up(N, 128))
    while T > 128 and _resident_bytes(T, d_pad, c_bytes, wk_bytes) > 0.6 * vmem_limit:
        T -= 128

    n_pad = _round_up(N, T)
    if n_pad != N:
        C = jnp.pad(C, ((0, n_pad - N), (0, n_pad - N)))
    if n_pad != N or d_pad != D:
        w_k = jnp.pad(w_k, ((0, n_pad - N), (0, d_pad - D)))
        w_r = jnp.pad(weight_f32, ((0, n_pad - N), (0, d_pad - D)))
    else:
        w_r = weight_f32

    grid_m = n_pad // T
    grid_k = n_pad // T

    partials = pl.pallas_call(
        _hreg_kernel,
        out_shape=jax.ShapeDtypeStruct((grid_m, 8, 128), jnp.float32),
        grid=(grid_m, grid_k),
        in_specs=[
            # C tile: lower-triangle steps remapped to (i, i) -> DMA dedup.
            pl.BlockSpec((T, T), lambda i, k: (i, jnp.maximum(k, i))),
            # W rows for the contraction: same remap -> DMA dedup.
            pl.BlockSpec((T, d_pad), lambda i, k: (jnp.maximum(k, i), 0)),
            # W rows for the elementwise product (f32), one fetch per row block.
            pl.BlockSpec((T, d_pad), lambda i, k: (i, 0)),
        ],
        out_specs=pl.BlockSpec((1, 8, 128), lambda i, k: (i, 0, 0)),
        scratch_shapes=[pltpu.VMEM((1, d_pad), jnp.float32)],
        compiler_params=pltpu.CompilerParams(
            dimension_semantics=("parallel", "arbitrary"),
            vmem_limit_bytes=vmem_limit,
        ),
    )(C, w_k, w_r)

    return jnp.sum(partials[:, 0, 0])


if __name__ == "__main__":
    # --- Case 1: small hierarchy (8 nodes), single-tile path --------------
    #        0
    #      /   \
    #     1     2
    #    / \   / \
    #   3   4 5   6
    #   |
    #   7
    parents = [-1, 0, 0, 1, 1, 2, 2, 3]
    N, D = len(parents), 32
    lambdas = np.ones(N)
    C = jnp.asarray(build_C(parents, lambdas), jnp.float32)

    key = jax.random.PRNGKey(0)
    k1, k2 = jax.random.split(key)
    weight = jax.random.normal(k1, (N, D), dtype=jnp.float32)
    ref = jnp.sum(C * (weight @ weight.T))

    # Exact f32 path: tight tolerance.
    r1_f32 = jax.block_until_ready(
        hierarchical_regularization(C, weight, precision="f32"))
    assert jnp.allclose(r1_f32, ref, rtol=1e-4, atol=1e-3), (r1_f32, ref)

    # Default bf16-operand path (f32 accumulation): looser tolerance.
    r1_bf16 = jax.block_until_ready(hierarchical_regularization(C, weight))
    assert jnp.allclose(r1_bf16, ref, rtol=1e-2, atol=0.5), (r1_bf16, ref)

    # --- Case 2: larger binary-tree hierarchy, exercises multi-tile grid --
    N2, D2 = 200, 96
    parents2 = [-1] + [(i - 1) // 2 for i in range(1, N2)]
    lambdas2 = 1.0 + (np.arange(N2) % 3) * 0.5
    C2 = jnp.asarray(build_C(parents2, lambdas2), jnp.float32)
    weight2 = jax.random.normal(k2, (N2, D2), dtype=jnp.float32)
    ref2 = jnp.sum(C2 * (weight2 @ weight2.T))

    # Exact f32 path, tile=128 -> 2x2 block grid: exercises the upper-triangle
    # skip, the x2 off-diagonal scaling and the DMA-dedup index remap.
    r2_f32 = jax.block_until_ready(
        hierarchical_regularization(C2, weight2, tile=128, precision="f32"))
    assert jnp.allclose(r2_f32, ref2, rtol=1e-4, atol=1e-2), (r2_f32, ref2)

    # Default path (bf16 C + bf16 W_k MXU operands, f32 accumulation).
    r2_bf16 = jax.block_until_ready(hierarchical_regularization(C2, weight2))
    assert jnp.allclose(r2_bf16, ref2, rtol=1e-2, atol=1.0), (r2_bf16, ref2)

    print("KERNEL_OK")
</pallas_src>

<mosaic_0001>
module attributes {stable_mosaic.version = 11 : i64} {
  func.func @_hreg_kernel(%arg0: i32, %arg1: i32, %arg2: memref<128x128xf32, #tpu.memory_space<vmem>>, %arg3: memref<128x128xf32, #tpu.memory_space<vmem>>, %arg4: memref<128x128xf32, #tpu.memory_space<vmem>>, %arg5: memref<1x8x128xf32, #tpu.memory_space<vmem>>, %arg6: memref<1x128xf32, #tpu.memory_space<vmem>>) attributes {dimension_semantics = [#tpu.dimension_semantics<parallel>, #tpu.dimension_semantics<arbitrary>], iteration_bounds = array<i64: 1, 1>, scalar_prefetch = 0 : i64, scratch_operands = 1 : i64, tpu.core_type = #tpu.core_type<tc>, window_params = [{transform_indices = @transform_0, window_bounds = array<i64: 128, 128>}, {transform_indices = @transform_1, window_bounds = array<i64: 128, 128>}, {transform_indices = @transform_2, window_bounds = array<i64: 128, 128>}, {transform_indices = @transform_3, window_bounds = array<i64: 1, 8, 128>}]} {
    %c0_i32 = arith.constant 0 : i32
    %0 = arith.cmpi eq, %arg1, %c0_i32 : i32
    %1 = arith.extui %0 : i1 to i32
    %c0_i32_0 = arith.constant 0 : i32
    %2 = arith.cmpi ne, %1, %c0_i32_0 : i32
    scf.if %2 {
      %cst = arith.constant 0.000000e+00 : f32
      %9 = vector.broadcast %cst : f32 to vector<1x128xf32>
      %c0 = arith.constant 0 : index
      %c0_4 = arith.constant 0 : index
      %10 = vector.load %arg6[%c0, %c0_4] : memref<1x128xf32, #tpu.memory_space<vmem>>, vector<1x128xf32>
      tpu.vector_store %arg6[%c0, %c0_4], %9 {strides = array<i32>} : memref<1x128xf32, #tpu.memory_space<vmem>>, vector<1x128xf32>,
    } else {
    }
    %3 = arith.cmpi sge, %arg1, %arg0 : i32
    %4 = arith.extui %3 : i1 to i32
    %c0_i32_1 = arith.constant 0 : i32
    %5 = arith.cmpi ne, %4, %c0_i32_1 : i32
    scf.if %5 {
      %c0 = arith.constant 0 : index
      %c0_4 = arith.constant 0 : index
      %9 = vector.load %arg2[%c0, %c0_4] : memref<128x128xf32, #tpu.memory_space<vmem>>, vector<128x128xf32>
      %c0_5 = arith.constant 0 : index
      %c0_6 = arith.constant 0 : index
      %10 = vector.load %arg3[%c0_5, %c0_6] : memref<128x128xf32, #tpu.memory_space<vmem>>, vector<128x128xf32>
      %cst = arith.constant dense<0.000000e+00> : vector<128x128xf32>
      %11 = tpu.matmul %9, %10, %cst {dimension_numbers = #tpu.dot_dimension_numbers<[1], [0], [0], [1], [0, 0, 1, 1], [], []>} : vector<128x128xf32>, vector<128x128xf32>, vector<128x128xf32> -> vector<128x128xf32>
      %c0_7 = arith.constant 0 : index
      %c0_8 = arith.constant 0 : index
      %12 = vector.load %arg4[%c0_7, %c0_8] : memref<128x128xf32, #tpu.memory_space<vmem>>, vector<128x128xf32>
      %13 = arith.mulf %11, %12 : vector<128x128xf32>
      %cst_9 = arith.constant dense<0.000000e+00> : vector<128xf32>
      %14 = vector.multi_reduction <add>, %13, %cst_9 [0] : vector<128x128xf32> to vector<128xf32>
      %15 = vector.shape_cast %14 : vector<128xf32> to vector<1x128xf32>
      %16 = arith.cmpi sgt, %arg1, %arg0 : i32
      %cst_10 = arith.constant 2.000000e+00 : f32
      %cst_11 = arith.constant 1.000000e+00 : f32
      %17 = arith.select %16, %cst_10, %cst_11 : f32
      %c0_12 = arith.constant 0 : index
      %c0_13 = arith.constant 0 : index
      %18 = vector.load %arg6[%c0_12, %c0_13] : memref<1x128xf32, #tpu.memory_space<vmem>>, vector<1x128xf32>
      %19 = vector.broadcast %17 : f32 to vector<1x128xf32>
      %20 = arith.mulf %19, %15 : vector<1x128xf32>
      %21 = arith.addf %18, %20 : vector<1x128xf32>
      %c0_14 = arith.constant 0 : index
      %c0_15 = arith.constant 0 : index
      %22 = vector.load %arg6[%c0_14, %c0_15] : memref<1x128xf32, #tpu.memory_space<vmem>>, vector<1x128xf32>
      tpu.vector_store %arg6[%c0_14, %c0_15], %21 {strides = array<i32>} : memref<1x128xf32, #tpu.memory_space<vmem>>, vector<1x128xf32>,
    } else {
    }
    %c0_i32_2 = arith.constant 0 : i32
    %6 = arith.cmpi eq, %arg1, %c0_i32_2 : i32
    %7 = arith.extui %6 : i1 to i32
    %c0_i32_3 = arith.constant 0 : i32
    %8 = arith.cmpi ne, %7, %c0_i32_3 : i32
    scf.if %8 {
      %c0 = arith.constant 0 : index
      %c0_4 = arith.constant 0 : index
      %9 = vector.load %arg6[%c0, %c0_4] : memref<1x128xf32, #tpu.memory_space<vmem>>, vector<1x128xf32>
      %10 = vector.shape_cast %9 : vector<1x128xf32> to vector<1x1x128xf32>
      %cst = arith.constant dense<0.000000e+00> : vector<1xf32>
      %11 = vector.multi_reduction <add>, %10, %cst [1, 2] : vector<1x1x128xf32> to vector<1xf32>
      %12 = vector.shape_cast %11 : vector<1xf32> to vector<1x1x1xf32>
      %13 = vector.extract %12[0, 0, 0] : f32 from vector<1x1x1xf32>
      %14 = vector.broadcast %13 : f32 to vector<1x8x128xf32>
      %c0_5 = arith.constant 0 : index
      %c0_6 = arith.constant 0 : index
      %c0_7 = arith.constant 0 : index
      %15 = vector.load %arg5[%c0_5, %c0_6, %c0_7] : memref<1x8x128xf32, #tpu.memory_space<vmem>>, vector<1x8x128xf32>
      tpu.vector_store %arg5[%c0_5, %c0_6, %c0_7], %14 {strides = array<i32>} : memref<1x8x128xf32, #tpu.memory_space<vmem>>, vector<1x8x128xf32>,
    } else {
    }
    return
  }
  func.func @transform_0(%arg0: i32, %arg1: i32) -> (i32, i32) {
    %0 = arith.maxsi %arg1, %arg0 : i32
    %c0_i32 = arith.constant 0 : i32
    return %arg0, %0 : i32, i32
  }
  func.func @transform_1(%arg0: i32, %arg1: i32) -> (i32, i32) {
    %0 = arith.maxsi %arg1, %arg0 : i32
    %c0_i32 = arith.constant 0 : i32
    %c0_i32_0 = arith.constant 0 : i32
    return %0, %c0_i32 : i32, i32
  }
  func.func @transform_2(%arg0: i32, %arg1: i32) -> (i32, i32) {
    %c0_i32 = arith.constant 0 : i32
    %c0_i32_0 = arith.constant 0 : i32
    return %arg0, %c0_i32 : i32, i32
  }
  func.func @transform_3(%arg0: i32, %arg1: i32) -> (i32, i32, i32) {
    %c0_i32 = arith.constant 0 : i32
    %c0_i32_0 = arith.constant 0 : i32
    %c0_i32_1 = arith.constant 0 : i32
    return %arg0, %c0_i32, %c0_i32_0 : i32, i32, i32
  }
}

</mosaic_0001>

<llo_original>
// kernel: tpu_custom_call.1
$region0: #{tpu_custom_call.1}
  #allocation0 [shape = 'u32[]', space=smem, size = 0x4, offset = 0x4, fixed_abs, tag = 'smem constant byte address 0x4 - core index']
  #allocation1 [shape = 'u32[72,128]{1,0:T(1,128)}', space=vmem, size = 0x9000, scoped, tag = 'internal scratch']
  #allocation2 [shape = 'f32[1,128]{1,0:T(1,128)}', space=vmem, size = 0x200, scoped, tag = 'scratch operand']
  %s0 = inlined_call_operand.hbm [shape: f32[128,128], index: 0, kind: input, shape index: {}]
  %s1 = inlined_call_operand.hbm [shape: f32[128,128], index: 1, kind: input, shape index: {}]
  %s2 = inlined_call_operand.hbm [shape: f32[128,128], index: 2, kind: input, shape index: {}]
  %s3 = inlined_call_operand.hbm [shape: f32[1,8,128], index: 3, kind: output, shape index: {}]
  %s4 = sld [smem:[#allocation0]]
  $region46: #{tpu_custom_call.1} parent=0
    _
  %s6 = ssub.s32 1, %s4
  %s7 = scalar_select 0, %s6, %s4
  $region1: #{tpu_custom_call.1} parent=0
    #allocation3 [shape = 'u8[65536]{0}', space=vmem, size = 0x10000, scoped, tag = 'input window, operand 0, single buffered']
    #allocation4 [shape = 's32[1]{0}', space=sflag, size = 0x4, scoped, tag = 'scoped memory for tpu_custom_call.1']
    #allocation5 [shape = 's32[1]{0}', space=sflag, size = 0x4, scoped, tag = 'scoped memory for tpu_custom_call.1']
    #allocation6 [shape = 'u8[65536]{0}', space=vmem, size = 0x10000, scoped, tag = 'input window, operand 1, single buffered']
    #allocation7 [shape = 's32[1]{0}', space=sflag, size = 0x4, scoped, tag = 'scoped memory for tpu_custom_call.1']
    #allocation8 [shape = 'u8[65536]{0}', space=vmem, size = 0x10000, scoped, tag = 'input window, operand 2, single buffered']
    #allocation9 [shape = 'u8[4096]{0}', space=vmem, size = 0x1000, scoped, tag = 'output window, operand 0, single buffered']
    %8 = vsyncpa [#allocation4], 0
    %9 = vsyncpa [#allocation7], 0
    %10 = vsyncpa [#allocation5], 0
    // Predicated region
    $region2: #{tpu_custom_call.1} parent=1 // pred_check
      _
    $region3: #{tpu_custom_call.1} parent=1 // pred_check_branch
      %12 = sbr.rel (0) target = $region5
    $region4: #{tpu_custom_call.1} parent=1 // pred_region
      %14 = vsyncadd [#allocation4], 0
      %s15 = sshll.u32 %s0, 4
      %s16 = int_to_ptr.hbm [resolvable:$true] %s15
      %s17 = sshll.u32 [#allocation3], 4
      %s18 = int_to_ptr.vmem [resolvable:$true] %s17
      %23 = dma.hbm_to_vmem [thread:$0]  %s16, 2048, %s18, [#allocation4], 128, 128, 8
    $region5: #{tpu_custom_call.1} parent=1 // pred_fallthru
      _
    // Predicated region
    $region6: #{tpu_custom_call.1} parent=1 // pred_check
      _
    $region7: #{tpu_custom_call.1} parent=1 // pred_check_branch
      %25 = sbr.rel (0) target = $region9
    $region8: #{tpu_custom_call.1} parent=1 // pred_region
      %27 = vsyncadd [#allocation7], 0
      %s28 = sshll.u32 %s1, 4
      %s29 = int_to_ptr.hbm [resolvable:$true] %s28
      %s30 = sshll.u32 [#allocation6], 4
      %s31 = int_to_ptr.vmem [resolvable:$true] %s30
      %36 = dma.hbm_to_vmem [thread:$0]  %s29, 2048, %s31, [#allocation7], 128, 128, 8
    $region9: #{tpu_custom_call.1} parent=1 // pred_fallthru
      _
    // Predicated region
    $region10: #{tpu_custom_call.1} parent=1 // pred_check
      _
    $region11: #{tpu_custom_call.1} parent=1 // pred_check_branch
      %38 = sbr.rel (0) target = $region13
    $region12: #{tpu_custom_call.1} parent=1 // pred_region
      %40 = vsyncadd [#allocation7], 0
      %s41 = sshll.u32 %s2, 4
      %s42 = int_to_ptr.hbm [resolvable:$true] %s41
      %s43 = sshll.u32 [#allocation8], 4
      %s44 = int_to_ptr.vmem [resolvable:$true] %s43
      %49 = dma.hbm_to_vmem [thread:$0]  %s42, 2048, %s44, [#allocation7], 128, 128, 8
    $region13: #{tpu_custom_call.1} parent=1 // pred_fallthru
      _
    // Predicated region
    $region14: #{tpu_custom_call.1} parent=1 // pred_check
      _
    $region15: #{tpu_custom_call.1} parent=1 // pred_check_branch
      %51 = sbr.rel (0) target = $region17
    $region16: #{tpu_custom_call.1} parent=1 // pred_region
      %53 = dma.done [#allocation4], 2048
    $region17: #{tpu_custom_call.1} parent=1 // pred_fallthru
      _
    // Predicated region
    $region18: #{tpu_custom_call.1} parent=1 // pred_check
      _
    $region19: #{tpu_custom_call.1} parent=1 // pred_check_branch
      %55 = sbr.rel (0) target = $region21
    $region20: #{tpu_custom_call.1} parent=1 // pred_region
      %57 = dma.done [#allocation7], 2048
    $region21: #{tpu_custom_call.1} parent=1 // pred_fallthru
      _
    // Predicated region
    $region22: #{tpu_custom_call.1} parent=1 // pred_check
      _
    $region23: #{tpu_custom_call.1} parent=1 // pred_check_branch
      %59 = sbr.rel (0) target = $region25
    $region24: #{tpu_custom_call.1} parent=1 // pred_region
      %61 = dma.done [#allocation7], 2048
    $region25: #{tpu_custom_call.1} parent=1 // pred_fallthru
      _
    %p62 = scmp.eq.s32.totalorder 0, 0
    // Predicated region
    $region26: #{tpu_custom_call.1} parent=1 // pred_check
      %p63 = pneg %p62
    $region27: #{tpu_custom_call.1} parent=1 // pred_check_branch
      %65 = sbr.rel (%p63) target = $region29
    $region28: #{tpu_custom_call.1} parent=1 // pred_region
      %66 = vst [vmem:[#allocation2] sm:$0x1] 0.0
    $region29: #{tpu_custom_call.1} parent=1 // pred_fallthru
      _
    %p67 = scmp.ge.s32.totalorder 0, 0
    // Predicated region
    $region30: #{tpu_custom_call.1} parent=1 // pred_check
      %p68 = pneg %p67
    $region31: #{tpu_custom_call.1} parent=1 // pred_check_branch
      %70 = sbr.rel (%p68) target = $region33
    $region32: #{tpu_custom_call.1} parent=1 // pred_region
      %v71 = vld [vmem:[#allocation3] sm:$0xff]
      %v72 = vld [vmem:[#allocation3 + $0x8] sm:$0xff]
      %v73 = vld [vmem:[#allocation3 + $0x10] sm:$0xff]
      %v74 = vld [vmem:[#allocation3 + $0x18] sm:$0xff]
      %v75 = vld [vmem:[#allocation3 + $0x20] sm:$0xff]
      %v76 = vld [vmem:[#allocation3 + $0x28] sm:$0xff]
      %v77 = vld [vmem:[#allocation3 + $0x30] sm:$0xff]
      %v78 = vld [vmem:[#allocation3 + $0x38] sm:$0xff]
      %v79 = vld [vmem:[#allocation3 + $0x40] sm:$0xff]
      %v80 = vld [vmem:[#allocation3 + $0x48] sm:$0xff]
      %v81 = vld [vmem:[#allocation3 + $0x50] sm:$0xff]
      %v82 = vld [vmem:[#allocation3 + $0x58] sm:$0xff]
      %v83 = vld [vmem:[#allocation3 + $0x60] sm:$0xff]
      %v84 = vld [vmem:[#allocation3 + $0x68] sm:$0xff]
      %v85 = vld [vmem:[#allocation3 + $0x70] sm:$0xff]
      %v86 = vld [vmem:[#allocation3 + $0x78] sm:$0xff]
      %v87 = vld [vmem:[#allocation6] sm:$0xff]
      %v88 = vld [vmem:[#allocation6 + $0x8] sm:$0xff]
      %v89 = vld [vmem:[#allocation6 + $0x10] sm:$0xff]
      %v90 = vld [vmem:[#allocation6 + $0x18] sm:$0xff]
      %v91 = vld [vmem:[#allocation6 + $0x20] sm:$0xff]
      %v92 = vld [vmem:[#allocation6 + $0x28] sm:$0xff]
      %v93 = vld [vmem:[#allocation6 + $0x30] sm:$0xff]
      %v94 = vld [vmem:[#allocation6 + $0x38] sm:$0xff]
      %v95 = vld [vmem:[#allocation6 + $0x40] sm:$0xff]
      %v96 = vld [vmem:[#allocation6 + $0x48] sm:$0xff]
      %v97 = vld [vmem:[#allocation6 + $0x50] sm:$0xff]
      %v98 = vld [vmem:[#allocation6 + $0x58] sm:$0xff]
      %v99 = vld [vmem:[#allocation6 + $0x60] sm:$0xff]
      %v100 = vld [vmem:[#allocation6 + $0x68] sm:$0xff]
      %v101 = vld [vmem:[#allocation6 + $0x70] sm:$0xff]
      %v102 = vld [vmem:[#allocation6 + $0x78] sm:$0xff]
      %103 = vmatpush.msra.mxu0 %v102
      %104 = vmatpush.msra.mxu0 %v101
      %105 = vmatpush.msra.mxu0 %v100
      %106 = vmatpush.msra.mxu0 %v99
      %107 = vmatpush.msra.mxu0 %v98
      %108 = vmatpush.msra.mxu0 %v97
      %109 = vmatpush.msra.mxu0 %v96
      %110 = vmatpush.msra.mxu0 %v95
      %111 = vmatpush.msra.mxu0 %v94
      %112 = vmatpush.msra.mxu0 %v93
      %113 = vmatpush.msra.mxu0 %v92
      %114 = vmatpush.msra.mxu0 %v91
      %115 = vmatpush.msra.mxu0 %v90
      %116 = vmatpush.msra.mxu0 %v89
      %117 = vmatpush.msra.mxu0 %v88
      %118 = vmatpush.msra.mxu0 %v87
      %119 = vmatmul.f32.gmra.mxu0 %v71
      %v120 = vpop.f32.mrf.mxu0
      %v121 = vadd.f32 0.0, %v120
      %122 = vmatmul.f32.gmra.mxu0 %v72
      %v123 = vpop.f32.mrf.mxu0
      %v124 = vadd.f32 0.0, %v123
      %125 = vmatmul.f32.gmra.mxu0 %v73
      %v126 = vpop.f32.mrf.mxu0
      %v127 = vadd.f32 0.0, %v126
      %128 = vmatmul.f32.gmra.mxu0 %v74
      %v129 = vpop.f32.mrf.mxu0
      %v130 = vadd.f32 0.0, %v129
      %131 = vmatmul.f32.gmra.mxu0 %v75
      %v132 = vpop.f32.mrf.mxu0
      %v133 = vadd.f32 0.0, %v132
      %134 = vmatmul.f32.gmra.mxu0 %v76
      %v135 = vpop.f32.mrf.mxu0
      %v136 = vadd.f32 0.0, %v135
      %137 = vmatmul.f32.gmra.mxu0 %v77
      %v138 = vpop.f32.mrf.mxu0
      %v139 = vadd.f32 0.0, %v138
      %140 = vmatmul.f32.gmra.mxu0 %v78
      %v141 = vpop.f32.mrf.mxu0
      %v142 = vadd.f32 0.0, %v141
      %143 = vmatmul.f32.gmra.mxu0 %v79
      %v144 = vpop.f32.mrf.mxu0
      %v145 = vadd.f32 0.0, %v144
      %146 = vmatmul.f32.gmra.mxu0 %v80
      %v147 = vpop.f32.mrf.mxu0
      %v148 = vadd.f32 0.0, %v147
      %149 = vmatmul.f32.gmra.mxu0 %v81
      %v150 = vpop.f32.mrf.mxu0
      %v151 = vadd.f32 0.0, %v150
      %152 = vmatmul.f32.gmra.mxu0 %v82
      %v153 = vpop.f32.mrf.mxu0
      %v154 = vadd.f32 0.0, %v153
      %155 = vmatmul.f32.gmra.mxu0 %v83
      %v156 = vpop.f32.mrf.mxu0
      %v157 = vadd.f32 0.0, %v156
      %158 = vmatmul.f32.gmra.mxu0 %v84
      %v159 = vpop.f32.mrf.mxu0
      %v160 = vadd.f32 0.0, %v159
      %161 = vmatmul.f32.gmra.mxu0 %v85
      %v162 = vpop.f32.mrf.mxu0
      %v163 = vadd.f32 0.0, %v162
      %164 = vmatmul.f32.gmra.mxu0 %v86
      %v165 = vpop.f32.mrf.mxu0
      %v166 = vadd.f32 0.0, %v165
      %167 = vdwg.mxu0
      %v168 = vld [vmem:[#allocation8] sm:$0xff]
      %v169 = vld [vmem:[#allocation8 + $0x8] sm:$0xff]
      %v170 = vld [vmem:[#allocation8 + $0x10] sm:$0xff]
      %v171 = vld [vmem:[#allocation8 + $0x18] sm:$0xff]
      %v172 = vld [vmem:[#allocation8 + $0x20] sm:$0xff]
      %v173 = vld [vmem:[#allocation8 + $0x28] sm:$0xff]
      %v174 = vld [vmem:[#allocation8 + $0x30] sm:$0xff]
      %v175 = vld [vmem:[#allocation8 + $0x38] sm:$0xff]
      %v176 = vld [vmem:[#allocation8 + $0x40] sm:$0xff]
      %v177 = vld [vmem:[#allocation8 + $0x48] sm:$0xff]
      %v178 = vld [vmem:[#allocation8 + $0x50] sm:$0xff]
      %v179 = vld [vmem:[#allocation8 + $0x58] sm:$0xff]
      %v180 = vld [vmem:[#allocation8 + $0x60] sm:$0xff]
      %v181 = vld [vmem:[#allocation8 + $0x68] sm:$0xff]
      %v182 = vld [vmem:[#allocation8 + $0x70] sm:$0xff]
      %v183 = vld [vmem:[#allocation8 + $0x78] sm:$0xff]
      %v184 = vmul.f32 %v121, %v168
      %v185 = vmul.f32 %v124, %v169
      %v186 = vmul.f32 %v127, %v170
      %v187 = vmul.f32 %v130, %v171
      %v188 = vmul.f32 %v133, %v172
      %v189 = vmul.f32 %v136, %v173
      %v190 = vmul.f32 %v139, %v174
      %v191 = vmul.f32 %v142, %v175
      %v192 = vmul.f32 %v145, %v176
      %v193 = vmul.f32 %v148, %v177
      %v194 = vmul.f32 %v151, %v178
      %v195 = vmul.f32 %v154, %v179
      %v196 = vmul.f32 %v157, %v180
      %v197 = vmul.f32 %v160, %v181
      %v198 = vmul.f32 %v163, %v182
      %v199 = vmul.f32 %v166, %v183
      %v200 = vadd.f32 %v184, %v185
      %v201 = vadd.f32 %v200, %v186
      %v202 = vadd.f32 %v201, %v187
      %v203 = vadd.f32 %v202, %v188
      %v204 = vadd.f32 %v203, %v189
      %v205 = vadd.f32 %v204, %v190
      %v206 = vadd.f32 %v205, %v191
      %v207 = vadd.f32 %v206, %v192
      %v208 = vadd.f32 %v207, %v193
      %v209 = vadd.f32 %v208, %v194
      %v210 = vadd.f32 %v209, %v195
      %v211 = vadd.f32 %v210, %v196
      %v212 = vadd.f32 %v211, %v197
      %v213 = vadd.f32 %v212, %v198
      %v214 = vadd.f32 %v213, %v199
      %v215 = vrot.slane %v214, 4
      %v216 = vadd.f32 %v214, %v215
      %v217 = vrot.slane %v216, 2
      %v218 = vadd.f32 %v216, %v217
      %v219 = vrot.slane %v218, 1
      %v220 = vadd.f32 %v218, %v219
      %p221 = scmp.gt.s32.totalorder 0, 0
      %s222 = scalar_select %p221, 2.0, 1.0
      %v223 = vld [vmem:[#allocation2] sm:$0x1]
      %v224 = vstv %s222
      %v225 = vmul.f32 %v224, %v220
      %v226 = vadd.f32 %v223, %v225
      %227 = vst [vmem:[#allocation2] sm:$0x1] %v226
    $region33: #{tpu_custom_call.1} parent=1 // pred_fallthru
      _
    // Predicated region
    $region34: #{tpu_custom_call.1} parent=1 // pred_check
      %p228 = pneg %p62
    $region35: #{tpu_custom_call.1} parent=1 // pred_check_branch
      %230 = sbr.rel (%p228) target = $region37
    $region36: #{tpu_custom_call.1} parent=1 // pred_region
      %v231 = vld [vmem:[#allocation2] sm:$0x1]
      %vm232 = vcmask 1040384
      %v233 = vsel %vm232, %v231, 0.0
      %234 = vadd.xlane.f32.xlu0 %v233
      %v235 = vpop.xlane.xlu0 %234
      %v236 = vrot.slane %v235, 4
      %v237 = vadd.f32 %v235, %v236
      %v238 = vrot.slane %v237, 2
      %v239 = vadd.f32 %v237, %v238
      %v240 = vrot.slane %v239, 1
      %v241 = vadd.f32 %v239, %v240
      %s242 = vtos %v241
      %v243 = vstv %s242
      %244 = vst [vmem:[#allocation9] sm:$0xff] %v243
    $region37: #{tpu_custom_call.1} parent=1 // pred_fallthru
      _
    // Predicated region
    $region38: #{tpu_custom_call.1} parent=1 // pred_check
      _
    $region39: #{tpu_custom_call.1} parent=1 // pred_check_branch
      %246 = sbr.rel (0) target = $region41
    $region40: #{tpu_custom_call.1} parent=1 // pred_region
      %248 = vsyncadd [#allocation5], 0
      %s250 = sshll.u32 [#allocation9], 4
      %s251 = int_to_ptr.vmem [resolvable:$true] %s250
      %s252 = sshll.u32 %s3, 4
      %s253 = int_to_ptr.hbm [resolvable:$true] %s252
      %255 = dma.vmem_to_hbm [thread:$0]  %s251, 128, %s253, [#allocation5]
    $region41: #{tpu_custom_call.1} parent=1 // pred_fallthru
      _
    // Predicated region
    $region42: #{tpu_custom_call.1} parent=1 // pred_check
      _
    $region43: #{tpu_custom_call.1} parent=1 // pred_check_branch
      %257 = sbr.rel (0) target = $region45
    $region44: #{tpu_custom_call.1} parent=1 // pred_region
      %259 = dma.done [#allocation5], 128
    $region45: #{tpu_custom_call.1} parent=1 // pred_fallthru
      _
    %260 = vsyncpa [#allocation4], 1
    %261 = vsyncpa [#allocation7], 1
    %262 = vsyncpa [#allocation5], 1

</llo_original>
